<compile_context>
chip_gen: v7x
topology: tpu7x:2x2x1
jax: 0.10.0
libtpu: 0.0.40
codegen_flags: <defaults>
</compile_context>

<pallas_src>
import jax
import jax.numpy as jnp
from jax.experimental import pallas as pl
from jax.experimental.pallas import tpu as pltpu


def _round_up(v, m):
    return ((v + m - 1) // m) * m


def _choose_block_planes(nc, h, w, dtype):
    """Number of (H, W) planes fused per grid step, sized for VMEM."""
    itemsize = jnp.dtype(dtype).itemsize
    pad_h = _round_up(max(h, 1), 8)       # sublane padding
    pad_w = _round_up(max(w, 1), 128)     # lane padding
    plane_in = pad_h * pad_w * itemsize   # input tile bytes (VMEM layout)
    plane_f32 = pad_h * pad_w * 4         # f32 temporaries (diffs / squares)
    # double-buffered input + ~5 f32-sized temporaries per plane
    per_plane = 2 * plane_in + 5 * plane_f32
    budget = 20 * 1024 * 1024
    b = max(1, budget // per_plane)
    return int(min(b, nc))


def _make_tv_block_kernel(nc_total, block_nc, h, w,
                          inv_ch, inv_cw, scale, needs_mask):
    def tv_kernel(x_ref, out_ref):
        x = x_ref[...]                                  # (B, H, W) block
        if x.dtype != jnp.float32:
            x = x.astype(jnp.float32)

        if needs_mask:
            # Zero out planes past the end of the (N*C) axis so the garbage
            # in the padded final block contributes nothing.
            i = pl.program_id(0)
            remaining = nc_total - i * block_nc
            plane_idx = jax.lax.broadcasted_iota(jnp.int32, (block_nc, 1, 1), 0)
            x = jnp.where(plane_idx < remaining, x, 0.0)

        partial = jnp.float32(0.0)
        if h > 1:
            dh = x[:, 1:, :] - x[:, :-1, :]             # vertical diffs
            partial = partial + inv_ch * jnp.sum(dh * dh)
        if w > 1:
            dw = x[:, :, 1:] - x[:, :, :-1]             # horizontal diffs
            partial = partial + inv_cw * jnp.sum(dw * dw)

        out_ref[...] = jnp.broadcast_to(scale * partial, (1, 1))

    return tv_kernel


def tv_loss(predImg, target=None):
    """Pallas TPU implementation of TV.forward(predImg, target)."""
    N, C, H, W = predImg.shape
    NC = N * C
    count_h = (H - 1) * W
    count_w = H * (W - 1)
    # Guard degenerate H==1 / W==1 (avoids a Python ZeroDivisionError; the
    # corresponding TV term is identically zero in that case anyway).
    inv_ch = (1.0 / count_h) if count_h > 0 else 0.0
    inv_cw = (1.0 / count_w) if count_w > 0 else 0.0
    scale = 2.0 / float(N)

    x = predImg.reshape(NC, H, W)

    B = _choose_block_planes(NC, H, W, predImg.dtype)
    num_blocks = pl.cdiv(NC, B)
    needs_mask = (NC % B) != 0

    kernel = _make_tv_block_kernel(NC, B, H, W, inv_ch, inv_cw, scale,
                                   needs_mask)

    partials = pl.pallas_call(
        kernel,
        out_shape=jax.ShapeDtypeStruct((num_blocks, 1), jnp.float32),
        grid=(num_blocks,),
        in_specs=[pl.BlockSpec((B, H, W), lambda i: (i, 0, 0))],
        out_specs=pl.BlockSpec((1, 1), lambda i: (i, 0)),
        compiler_params=pltpu.CompilerParams(
            # Independent per-block partials -> safe to shard across
            # TensorCores (2x on v7x; neutral on single-TC v5e/v6e).
            dimension_semantics=("parallel",),
            vmem_limit_bytes=32 * 1024 * 1024,
        ),
    )(x)

    # Tiny final reduction over per-block partials (already weighted).
    return jnp.sum(partials)


def tv_loss_ref(predImg):
    """Pure-JAX reference for verification."""
    N, C, H, W = predImg.shape
    x = predImg.astype(jnp.float32)
    count_h = (H - 1) * W
    count_w = H * (W - 1)
    h_tv = jnp.sum((x[:, :, 1:, :] - x[:, :, :-1, :]) ** 2)
    w_tv = jnp.sum((x[:, :, :, 1:] - x[:, :, :, :-1]) ** 2)
    return 2.0 * (h_tv / count_h + w_tv / count_w) / N


if __name__ == "__main__":
    key = jax.random.PRNGKey(0)
    k1, k2 = jax.random.split(key)
    predImg = jax.random.normal(k1, (2, 4, 16, 16), dtype=jnp.float32)
    target = jax.random.normal(k2, (2, 4, 16, 16), dtype=jnp.float32)  # unused

    out = tv_loss(predImg, target)
    jax.block_until_ready(out)

    ref = tv_loss_ref(predImg)
    assert jnp.allclose(out, ref, rtol=1e-5, atol=1e-5), (out, ref)
    print("KERNEL_OK")
</pallas_src>

<mosaic_0001>
module attributes {stable_mosaic.version = 11 : i64} {
  func.func @tv_kernel(%arg0: i32, %arg1: memref<8x16x16xf32, #tpu.memory_space<vmem>>, %arg2: memref<1x1xf32, #tpu.memory_space<vmem>>) attributes {dimension_semantics = [#tpu.dimension_semantics<parallel>], iteration_bounds = array<i64: 1>, scalar_prefetch = 0 : i64, scratch_operands = 0 : i64, tpu.core_type = #tpu.core_type<tc>, window_params = [{transform_indices = @transform_0, window_bounds = array<i64: 8, 16, 16>}, {transform_indices = @transform_1, window_bounds = array<i64: 1, 1>}]} {
    %c0 = arith.constant 0 : index
    %c0_0 = arith.constant 0 : index
    %c0_1 = arith.constant 0 : index
    %0 = vector.load %arg1[%c0, %c0_0, %c0_1] : memref<8x16x16xf32, #tpu.memory_space<vmem>>, vector<8x16x16xf32>
    %1 = vector.extract_strided_slice %0 {offsets = [0, 1, 0], sizes = [8, 15, 16], strides = [1, 1, 1]} : vector<8x16x16xf32> to vector<8x15x16xf32>
    %2 = vector.extract_strided_slice %0 {offsets = [0, 0, 0], sizes = [8, 15, 16], strides = [1, 1, 1]} : vector<8x16x16xf32> to vector<8x15x16xf32>
    %3 = arith.subf %1, %2 : vector<8x15x16xf32>
    %4 = arith.mulf %3, %3 : vector<8x15x16xf32>
    %5 = vector.shape_cast %4 : vector<8x15x16xf32> to vector<1x8x15x16xf32>
    %cst = arith.constant dense<0.000000e+00> : vector<1xf32>
    %6 = vector.multi_reduction <add>, %5, %cst [1, 2, 3] : vector<1x8x15x16xf32> to vector<1xf32>
    %7 = vector.shape_cast %6 : vector<1xf32> to vector<1x1x1x1xf32>
    %8 = vector.extract %7[0, 0, 0, 0] : f32 from vector<1x1x1x1xf32>
    %cst_2 = arith.constant 0.00416666688 : f32
    %9 = arith.mulf %cst_2, %8 : f32
    %cst_3 = arith.constant 0.000000e+00 : f32
    %10 = arith.addf %cst_3, %9 : f32
    %11 = vector.extract_strided_slice %0 {offsets = [0, 0, 1], sizes = [8, 16, 15], strides = [1, 1, 1]} : vector<8x16x16xf32> to vector<8x16x15xf32>
    %12 = vector.extract_strided_slice %0 {offsets = [0, 0, 0], sizes = [8, 16, 15], strides = [1, 1, 1]} : vector<8x16x16xf32> to vector<8x16x15xf32>
    %13 = arith.subf %11, %12 : vector<8x16x15xf32>
    %14 = arith.mulf %13, %13 : vector<8x16x15xf32>
    %15 = vector.shape_cast %14 : vector<8x16x15xf32> to vector<1x8x16x15xf32>
    %cst_4 = arith.constant dense<0.000000e+00> : vector<1xf32>
    %16 = vector.multi_reduction <add>, %15, %cst_4 [1, 2, 3] : vector<1x8x16x15xf32> to vector<1xf32>
    %17 = vector.shape_cast %16 : vector<1xf32> to vector<1x1x1x1xf32>
    %18 = vector.extract %17[0, 0, 0, 0] : f32 from vector<1x1x1x1xf32>
    %cst_5 = arith.constant 0.00416666688 : f32
    %19 = arith.mulf %cst_5, %18 : f32
    %20 = arith.addf %10, %19 : f32
    %cst_6 = arith.constant 1.000000e+00 : f32
    %21 = arith.mulf %cst_6, %20 : f32
    %22 = vector.broadcast %21 : f32 to vector<1x1xf32>
    %c0_7 = arith.constant 0 : index
    %c0_8 = arith.constant 0 : index
    %23 = vector.load %arg2[%c0_7, %c0_8] : memref<1x1xf32, #tpu.memory_space<vmem>>, vector<1x1xf32>
    tpu.vector_store %arg2[%c0_7, %c0_8], %22 {strides = array<i32>} : memref<1x1xf32, #tpu.memory_space<vmem>>, vector<1x1xf32>,
    return
  }
  func.func @transform_0(%arg0: i32) -> (i32, i32, i32) {
    %c0_i32 = arith.constant 0 : i32
    %c0_i32_0 = arith.constant 0 : i32
    %c0_i32_1 = arith.constant 0 : i32
    return %arg0, %c0_i32, %c0_i32_0 : i32, i32, i32
  }
  func.func @transform_1(%arg0: i32) -> (i32, i32) {
    %c0_i32 = arith.constant 0 : i32
    %c0_i32_0 = arith.constant 0 : i32
    return %arg0, %c0_i32 : i32, i32
  }
}

</mosaic_0001>

<llo_original>
// kernel: tpu_custom_call.1
$region0: #{tpu_custom_call.1}
  #allocation0 [shape = 'u32[]', space=smem, size = 0x4, offset = 0x4, fixed_abs, tag = 'smem constant byte address 0x4 - core index']
  #allocation1 [shape = 'u32[144,128]{1,0:T(1,128)}', space=vmem, size = 0x12000, scoped, tag = 'internal scratch']
  %s0 = inlined_call_operand.hbm [shape: f32[8,16,16], index: 0, kind: input, shape index: {}]
  %s1 = inlined_call_operand.hbm [shape: f32[1,1], index: 1, kind: output, shape index: {}]
  %s2 = sld [smem:[#allocation0]]
  $region18: #{tpu_custom_call.1} parent=0
    _
  %s4 = ssub.s32 1, %s2
  %s5 = scalar_select 0, %s4, %s2
  $region1: #{tpu_custom_call.1} parent=0
    #allocation2 [shape = 'u8[65536]{0}', space=vmem, size = 0x10000, scoped, tag = 'input window, operand 0, single buffered']
    #allocation3 [shape = 's32[1]{0}', space=sflag, size = 0x4, scoped, tag = 'scoped memory for tpu_custom_call.1']
    #allocation4 [shape = 's32[1]{0}', space=sflag, size = 0x4, scoped, tag = 'scoped memory for tpu_custom_call.1']
    #allocation5 [shape = 'u8[512]{0}', space=vmem, size = 0x400, scoped, tag = 'output window, operand 0, single buffered']
    %6 = vsyncpa [#allocation3], 0
    %7 = vsyncpa [#allocation4], 0
    // Predicated region
    $region2: #{tpu_custom_call.1} parent=1 // pred_check
      _
    $region3: #{tpu_custom_call.1} parent=1 // pred_check_branch
      %9 = sbr.rel (0) target = $region5
    $region4: #{tpu_custom_call.1} parent=1 // pred_region
      %s11 = ssub.s32 2048, 2048
      %12 = vsyncadd [#allocation3], %s11
      %s13 = sshll.u32 [#allocation2], 4
      %s14 = int_to_ptr.vmem [resolvable:$true] %s13
      %19 = dma.hbm_to_vmem [thread:$0]  %s0, 2048, %s14, [#allocation3], 128, 128, 8
    $region5: #{tpu_custom_call.1} parent=1 // pred_fallthru
      _
    // Predicated region
    $region6: #{tpu_custom_call.1} parent=1 // pred_check
      _
    $region7: #{tpu_custom_call.1} parent=1 // pred_check_branch
      %21 = sbr.rel (0) target = $region9
    $region8: #{tpu_custom_call.1} parent=1 // pred_region
      %22 = dma.done [#allocation3], 2048
    $region9: #{tpu_custom_call.1} parent=1 // pred_fallthru
      _
    %v23 = vld [vmem:[#allocation2] sm:$0xff]
    %v24 = vld [vmem:[#allocation2 + $0x8] sm:$0xff]
    %v25 = vld [vmem:[#allocation2 + $0x10] sm:$0xff]
    %v26 = vld [vmem:[#allocation2 + $0x18] sm:$0xff]
    %v27 = vld [vmem:[#allocation2 + $0x20] sm:$0xff]
    %v28 = vld [vmem:[#allocation2 + $0x28] sm:$0xff]
    %v29 = vld [vmem:[#allocation2 + $0x30] sm:$0xff]
    %v30 = vld [vmem:[#allocation2 + $0x38] sm:$0xff]
    %v31 = vld [vmem:[#allocation2 + $0x40] sm:$0xff]
    %v32 = vld [vmem:[#allocation2 + $0x48] sm:$0xff]
    %v33 = vld [vmem:[#allocation2 + $0x50] sm:$0xff]
    %v34 = vld [vmem:[#allocation2 + $0x58] sm:$0xff]
    %v35 = vld [vmem:[#allocation2 + $0x60] sm:$0xff]
    %v36 = vld [vmem:[#allocation2 + $0x68] sm:$0xff]
    %v37 = vld [vmem:[#allocation2 + $0x70] sm:$0xff]
    %v38 = vld [vmem:[#allocation2 + $0x78] sm:$0xff]
    %vm55 = vcmask 1040384
    %v56 = vrot.slane %v23, 7
    %v57 = vrot.slane %v24, 7
    %v58 = vsel %vm55, %v56, %v57
    %v59 = vrot.slane %v25, 7
    %v60 = vrot.slane %v26, 7
    %v61 = vsel %vm55, %v59, %v60
    %v62 = vrot.slane %v27, 7
    %v63 = vrot.slane %v28, 7
    %v64 = vsel %vm55, %v62, %v63
    %v65 = vrot.slane %v29, 7
    %v66 = vrot.slane %v30, 7
    %v67 = vsel %vm55, %v65, %v66
    %v68 = vrot.slane %v31, 7
    %v69 = vrot.slane %v32, 7
    %v70 = vsel %vm55, %v68, %v69
    %v71 = vrot.slane %v33, 7
    %v72 = vrot.slane %v34, 7
    %v73 = vsel %vm55, %v71, %v72
    %v74 = vrot.slane %v35, 7
    %v75 = vrot.slane %v36, 7
    %v76 = vsel %vm55, %v74, %v75
    %v77 = vrot.slane %v37, 7
    %v78 = vrot.slane %v38, 7
    %v79 = vsel %vm55, %v77, %v78
    %v96 = vsub.f32 %v23, %v56
    %v97 = vsub.f32 %v24, %v58
    %v98 = vsub.f32 %v25, %v59
    %v99 = vsub.f32 %v26, %v61
    %v100 = vsub.f32 %v27, %v62
    %v101 = vsub.f32 %v28, %v64
    %v102 = vsub.f32 %v29, %v65
    %v103 = vsub.f32 %v30, %v67
    %v104 = vsub.f32 %v31, %v68
    %v105 = vsub.f32 %v32, %v70
    %v106 = vsub.f32 %v33, %v71
    %v107 = vsub.f32 %v34, %v73
    %v108 = vsub.f32 %v35, %v74
    %v109 = vsub.f32 %v36, %v76
    %v110 = vsub.f32 %v37, %v77
    %v111 = vsub.f32 %v38, %v79
    %v112 = vmul.f32 %v96, %v96
    %v113 = vmul.f32 %v97, %v97
    %v114 = vmul.f32 %v98, %v98
    %v115 = vmul.f32 %v99, %v99
    %v116 = vmul.f32 %v100, %v100
    %v117 = vmul.f32 %v101, %v101
    %v118 = vmul.f32 %v102, %v102
    %v119 = vmul.f32 %v103, %v103
    %v120 = vmul.f32 %v104, %v104
    %v121 = vmul.f32 %v105, %v105
    %v122 = vmul.f32 %v106, %v106
    %v123 = vmul.f32 %v107, %v107
    %v124 = vmul.f32 %v108, %v108
    %v125 = vmul.f32 %v109, %v109
    %v126 = vmul.f32 %v110, %v110
    %v127 = vmul.f32 %v111, %v111
    %vm144 = vcmask 1046528
    %v145 = vrot.slane %v112, 1
    %v146 = vrot.slane %v113, 1
    %v147 = vsel %vm144, %v145, %v146
    %v148 = vrot.slane %v114, 1
    %v149 = vrot.slane %v115, 1
    %v150 = vsel %vm144, %v148, %v149
    %v151 = vrot.slane %v116, 1
    %v152 = vrot.slane %v117, 1
    %v153 = vsel %vm144, %v151, %v152
    %v154 = vrot.slane %v118, 1
    %v155 = vrot.slane %v119, 1
    %v156 = vsel %vm144, %v154, %v155
    %v157 = vrot.slane %v120, 1
    %v158 = vrot.slane %v121, 1
    %v159 = vsel %vm144, %v157, %v158
    %v160 = vrot.slane %v122, 1
    %v161 = vrot.slane %v123, 1
    %v162 = vsel %vm144, %v160, %v161
    %v163 = vrot.slane %v124, 1
    %v164 = vrot.slane %v125, 1
    %v165 = vsel %vm144, %v163, %v164
    %v166 = vrot.slane %v126, 1
    %v167 = vrot.slane %v127, 1
    %v168 = vsel %vm144, %v166, %v167
    %vm185 = vcmask 130048
    %v186 = vsel %vm185, %v147, 0.0
    %vm187 = vcmask 129024
    %v188 = vsel %vm187, %v146, 0.0
    %v189 = vadd.f32 %v186, %v188
    %v190 = vsel %vm185, %v150, 0.0
    %v191 = vadd.f32 %v189, %v190
    %v192 = vsel %vm187, %v149, 0.0
    %v193 = vadd.f32 %v191, %v192
    %v194 = vsel %vm185, %v153, 0.0
    %v195 = vadd.f32 %v193, %v194
    %v196 = vsel %vm187, %v152, 0.0
    %v197 = vadd.f32 %v195, %v196
    %v198 = vsel %vm185, %v156, 0.0
    %v199 = vadd.f32 %v197, %v198
    %v200 = vsel %vm187, %v155, 0.0
    %v201 = vadd.f32 %v199, %v200
    %v202 = vsel %vm185, %v159, 0.0
    %v203 = vadd.f32 %v201, %v202
    %v204 = vsel %vm187, %v158, 0.0
    %v205 = vadd.f32 %v203, %v204
    %v206 = vsel %vm185, %v162, 0.0
    %v207 = vadd.f32 %v205, %v206
    %v208 = vsel %vm187, %v161, 0.0
    %v209 = vadd.f32 %v207, %v208
    %v210 = vsel %vm185, %v165, 0.0
    %v211 = vadd.f32 %v209, %v210
    %v212 = vsel %vm187, %v164, 0.0
    %v213 = vadd.f32 %v211, %v212
    %v214 = vsel %vm185, %v168, 0.0
    %v215 = vadd.f32 %v213, %v214
    %v216 = vsel %vm187, %v167, 0.0
    %v217 = vadd.f32 %v215, %v216
    %218 = vadd.xlane.f32.xlu0 %v217
    %v219 = vpop.xlane.xlu0 %218
    %v220 = vrot.slane %v219, 4
    %v221 = vadd.f32 %v219, %v220
    %v222 = vrot.slane %v221, 2
    %v223 = vadd.f32 %v221, %v222
    %v224 = vrot.slane %v223, 1
    %v225 = vadd.f32 %v223, %v224
    %s226 = vtos %v225
    %s227 = smul.f32 %s226, 0.004166667
    %s228 = sadd.f32 %s227, 0.0
    %229 = vrot.lane.b32.xlu0 %v23, 1
    %v230 = vpop.permute.xlu0 %229
    %231 = vrot.lane.b32.xlu0 %v24, 1
    %v232 = vpop.permute.xlu0 %231
    %233 = vrot.lane.b32.xlu0 %v25, 1
    %v234 = vpop.permute.xlu0 %233
    %235 = vrot.lane.b32.xlu0 %v26, 1
    %v236 = vpop.permute.xlu0 %235
    %237 = vrot.lane.b32.xlu0 %v27, 1
    %v238 = vpop.permute.xlu0 %237
    %239 = vrot.lane.b32.xlu0 %v28, 1
    %v240 = vpop.permute.xlu0 %239
    %241 = vrot.lane.b32.xlu0 %v29, 1
    %v242 = vpop.permute.xlu0 %241
    %243 = vrot.lane.b32.xlu0 %v30, 1
    %v244 = vpop.permute.xlu0 %243
    %245 = vrot.lane.b32.xlu0 %v31, 1
    %v246 = vpop.permute.xlu0 %245
    %247 = vrot.lane.b32.xlu0 %v32, 1
    %v248 = vpop.permute.xlu0 %247
    %249 = vrot.lane.b32.xlu0 %v33, 1
    %v250 = vpop.permute.xlu0 %249
    %251 = vrot.lane.b32.xlu0 %v34, 1
    %v252 = vpop.permute.xlu0 %251
    %253 = vrot.lane.b32.xlu0 %v35, 1
    %v254 = vpop.permute.xlu0 %253
    %255 = vrot.lane.b32.xlu0 %v36, 1
    %v256 = vpop.permute.xlu0 %255
    %257 = vrot.lane.b32.xlu0 %v37, 1
    %v258 = vpop.permute.xlu0 %257
    %259 = vrot.lane.b32.xlu0 %v38, 1
    %v260 = vpop.permute.xlu0 %259
    %v277 = vsub.f32 %v23, %v230
    %v278 = vsub.f32 %v24, %v232
    %v279 = vsub.f32 %v25, %v234
    %v280 = vsub.f32 %v26, %v236
    %v281 = vsub.f32 %v27, %v238
    %v282 = vsub.f32 %v28, %v240
    %v283 = vsub.f32 %v29, %v242
    %v284 = vsub.f32 %v30, %v244
    %v285 = vsub.f32 %v31, %v246
    %v286 = vsub.f32 %v32, %v248
    %v287 = vsub.f32 %v33, %v250
    %v288 = vsub.f32 %v34, %v252
    %v289 = vsub.f32 %v35, %v254
    %v290 = vsub.f32 %v36, %v256
    %v291 = vsub.f32 %v37, %v258
    %v292 = vsub.f32 %v38, %v260
    %v293 = vmul.f32 %v277, %v277
    %v294 = vmul.f32 %v278, %v278
    %v295 = vmul.f32 %v279, %v279
    %v296 = vmul.f32 %v280, %v280
    %v297 = vmul.f32 %v281, %v281
    %v298 = vmul.f32 %v282, %v282
    %v299 = vmul.f32 %v283, %v283
    %v300 = vmul.f32 %v284, %v284
    %v301 = vmul.f32 %v285, %v285
    %v302 = vmul.f32 %v286, %v286
    %v303 = vmul.f32 %v287, %v287
    %v304 = vmul.f32 %v288, %v288
    %v305 = vmul.f32 %v289, %v289
    %v306 = vmul.f32 %v290, %v290
    %v307 = vmul.f32 %v291, %v291
    %v308 = vmul.f32 %v292, %v292
    %325 = vrot.lane.b32.xlu0 %v293, 127
    %v326 = vpop.permute.xlu0 %325
    %327 = vrot.lane.b32.xlu0 %v294, 127
    %v328 = vpop.permute.xlu0 %327
    %329 = vrot.lane.b32.xlu0 %v295, 127
    %v330 = vpop.permute.xlu0 %329
    %331 = vrot.lane.b32.xlu0 %v296, 127
    %v332 = vpop.permute.xlu0 %331
    %333 = vrot.lane.b32.xlu0 %v297, 127
    %v334 = vpop.permute.xlu0 %333
    %335 = vrot.lane.b32.xlu0 %v298, 127
    %v336 = vpop.permute.xlu0 %335
    %337 = vrot.lane.b32.xlu0 %v299, 127
    %v338 = vpop.permute.xlu0 %337
    %339 = vrot.lane.b32.xlu0 %v300, 127
    %v340 = vpop.permute.xlu0 %339
    %341 = vrot.lane.b32.xlu0 %v301, 127
    %v342 = vpop.permute.xlu0 %341
    %343 = vrot.lane.b32.xlu0 %v302, 127
    %v344 = vpop.permute.xlu0 %343
    %345 = vrot.lane.b32.xlu0 %v303, 127
    %v346 = vpop.permute.xlu0 %345
    %347 = vrot.lane.b32.xlu0 %v304, 127
    %v348 = vpop.permute.xlu0 %347
    %349 = vrot.lane.b32.xlu0 %v305, 127
    %v350 = vpop.permute.xlu0 %349
    %351 = vrot.lane.b32.xlu0 %v306, 127
    %v352 = vpop.permute.xlu0 %351
    %353 = vrot.lane.b32.xlu0 %v307, 127
    %v354 = vpop.permute.xlu0 %353
    %355 = vrot.lane.b32.xlu0 %v308, 127
    %v356 = vpop.permute.xlu0 %355
    %vm373 = vcmask 121856
    %v374 = vsel %vm373, %v326, 0.0
    %v375 = vsel %vm373, %v328, 0.0
    %v376 = vadd.f32 %v374, %v375
    %v377 = vsel %vm373, %v330, 0.0
    %v378 = vadd.f32 %v376, %v377
    %v379 = vsel %vm373, %v332, 0.0
    %v380 = vadd.f32 %v378, %v379
    %v381 = vsel %vm373, %v334, 0.0
    %v382 = vadd.f32 %v380, %v381
    %v383 = vsel %vm373, %v336, 0.0
    %v384 = vadd.f32 %v382, %v383
    %v385 = vsel %vm373, %v338, 0.0
    %v386 = vadd.f32 %v384, %v385
    %v387 = vsel %vm373, %v340, 0.0
    %v388 = vadd.f32 %v386, %v387
    %v389 = vsel %vm373, %v342, 0.0
    %v390 = vadd.f32 %v388, %v389
    %v391 = vsel %vm373, %v344, 0.0
    %v392 = vadd.f32 %v390, %v391
    %v393 = vsel %vm373, %v346, 0.0
    %v394 = vadd.f32 %v392, %v393
    %v395 = vsel %vm373, %v348, 0.0
    %v396 = vadd.f32 %v394, %v395
    %v397 = vsel %vm373, %v350, 0.0
    %v398 = vadd.f32 %v396, %v397
    %v399 = vsel %vm373, %v352, 0.0
    %v400 = vadd.f32 %v398, %v399
    %v401 = vsel %vm373, %v354, 0.0
    %v402 = vadd.f32 %v400, %v401
    %v403 = vsel %vm373, %v356, 0.0
    %v404 = vadd.f32 %v402, %v403
    %405 = vadd.xlane.f32.xlu0 %v404
    %v406 = vpop.xlane.xlu0 %405
    %v407 = vrot.slane %v406, 4
    %v408 = vadd.f32 %v406, %v407
    %v409 = vrot.slane %v408, 2
    %v410 = vadd.f32 %v408, %v409
    %v411 = vrot.slane %v410, 1
    %v412 = vadd.f32 %v410, %v411
    %s413 = vtos %v412
    %s414 = smul.f32 %s413, 0.004166667
    %s415 = sadd.f32 %s228, %s414
    %v416 = vstv %s415
    %vm417 = vcmask 0
    %418 = vst.msk [vmem:[#allocation5] sm:$0x1] %vm417, %v416
    // Predicated region
    $region10: #{tpu_custom_call.1} parent=1 // pred_check
      _
    $region11: #{tpu_custom_call.1} parent=1 // pred_check_branch
      %420 = sbr.rel (0) target = $region13
    $region12: #{tpu_custom_call.1} parent=1 // pred_region
      %s422 = ssub.s32 16, 16
      %423 = vsyncadd [#allocation4], %s422
      %s425 = sshll.u32 [#allocation5], 4
      %s426 = int_to_ptr.vmem [resolvable:$true] %s425
      %428 = dma.vmem_to_hbm [thread:$0]  %s426, 16, %s1, [#allocation4]
    $region13: #{tpu_custom_call.1} parent=1 // pred_fallthru
      _
    // Predicated region
    $region14: #{tpu_custom_call.1} parent=1 // pred_check
      _
    $region15: #{tpu_custom_call.1} parent=1 // pred_check_branch
      %430 = sbr.rel (0) target = $region17
    $region16: #{tpu_custom_call.1} parent=1 // pred_region
      %431 = dma.done [#allocation4], 16
    $region17: #{tpu_custom_call.1} parent=1 // pred_fallthru
      _
    %432 = vsyncpa [#allocation3], 1
    %433 = vsyncpa [#allocation4], 1

</llo_original>
